<compile_context>
chip_gen: v7x
topology: tpu7x:2x2x1
jax: 0.10.0
libtpu: 0.0.40
codegen_flags: <defaults>
</compile_context>

<pallas_src>
import jax
import jax.numpy as jnp
from jax.experimental import pallas as pl
from jax.experimental.pallas import tpu as pltpu


def _round_up(x, m):
    return ((x + m - 1) // m) * m


def _protonet_scores_kernel(q_ref, p_ref, qn_ref, pn_ref, out_ref):
    # q_ref  : (TB, TD)      bf16  query D-tile
    # p_ref  : (TD, M_pad)   bf16  prototype D-tile, MXU-native (K, N) layout
    # qn_ref : (TB, 1)       f32   query squared norms (full-D, precomputed)
    # pn_ref : (1, M_pad)    f32   prototype squared norms (full-D, precomputed)
    # out_ref: (TB, M_pad)   f32   resident across the D-reduction axis
    k = pl.program_id(1)

    @pl.when(k == 0)
    def _init():
        out_ref[...] = jnp.zeros_like(out_ref)

    # Inner loop is MXU-only: accumulate q . p into the resident output block.
    out_ref[...] += jnp.dot(q_ref[...], p_ref[...],
                            preferred_element_type=jnp.float32)

    @pl.when(k == pl.num_programs(1) - 1)
    def _finalize():
        # dist = ||q||^2 + ||p||^2 - 2 q.p ; clamp tiny bf16 cancellation
        # negatives to 0, then negate.
        dist = qn_ref[...] + pn_ref[...] - 2.0 * out_ref[...]
        out_ref[...] = -jnp.maximum(dist, 0.0)


def protonet_forward(query, support):
    """query: (B, C, H, W); support: (num_class, B, C, H, W)."""
    B = query.shape[0]
    num_class = support.shape[0]
    # NOTE: the torch forward prints num_class (host-side side effect only);
    # dropped here — no effect on the returned values.

    # Plain-JAX glue mirroring the torch .view() flattens + prototype mean.
    q_flat = query.reshape(B, -1).astype(jnp.float32)                 # (B, D)
    s_flat = support.reshape(num_class, B, -1).astype(jnp.float32)    # (M, B, D)
    D = q_flat.shape[1]
    assert D == s_flat.shape[2]

    prototypes = jnp.mean(s_flat, axis=1)                             # (M, D) f32
    q_bf = q_flat.astype(jnp.bfloat16)                                # (B, D)
    pT_bf = prototypes.T.astype(jnp.bfloat16)                         # (D, M) (K,N)

    # Squared norms from the bf16-rounded values, f32 accumulation; computed
    # once in the wrapper so the kernel's inner loop has no VPU/XLU side work.
    qn = jnp.sum(jnp.square(q_bf.astype(jnp.float32)), axis=1,
                 keepdims=True)                                       # (B, 1)
    pn = jnp.sum(jnp.square(pT_bf.astype(jnp.float32)), axis=0,
                 keepdims=True)                                       # (1, M)

    # ---- tiling / padding ------------------------------------------------
    M_pad = _round_up(max(num_class, 1), 128)       # lane-dense output / MXU N
    TB = 128 if B >= 128 else _round_up(B, 16)      # bf16 min sublane tile = 16
    B_pad = _round_up(B, TB)

    # Derive TD from a VMEM budget: double-buffered bf16 q (TB, TD) and
    # p (TD, M_pad) tiles.  ~24 MiB working set fits v7x's 64 MiB physical
    # VMEM as well as v5e/v6e, under a 48 MiB scoped limit.
    VMEM_BUDGET = 24 * 1024 * 1024
    bytes_per_td = 2 * 2 * (TB + M_pad)             # 2 buffers x 2 B/elem
    td_cap = max(512, (VMEM_BUDGET // bytes_per_td) // 128 * 128)
    D_128 = _round_up(D, 128)
    if D_128 <= td_cap:
        TD = D_128                                  # single k step: prototypes
        D_pad = D_128                               # fully VMEM-resident
    else:
        TD = td_cap
        D_pad = _round_up(D, TD)

    q_pad = jnp.pad(q_bf, ((0, B_pad - B), (0, D_pad - D)))
    p_pad = jnp.pad(pT_bf, ((0, D_pad - D), (0, M_pad - num_class)))
    qn_pad = jnp.pad(qn, ((0, B_pad - B), (0, 0)))
    pn_pad = jnp.pad(pn, ((0, 0), (0, M_pad - num_class)))

    grid = (B_pad // TB, D_pad // TD)

    scores_padded = pl.pallas_call(
        _protonet_scores_kernel,
        out_shape=jax.ShapeDtypeStruct((B_pad, M_pad), jnp.float32),
        grid_spec=pltpu.PrefetchScalarGridSpec(
            num_scalar_prefetch=0,
            grid=grid,
            in_specs=[
                pl.BlockSpec((TB, TD), lambda i, k: (i, k)),       # query tile
                pl.BlockSpec((TD, M_pad), lambda i, k: (k, 0)),    # proto (K,N)
                pl.BlockSpec((TB, 1), lambda i, k: (i, 0)),        # query norms
                pl.BlockSpec((1, M_pad), lambda i, k: (0, 0)),     # proto norms
            ],
            out_specs=pl.BlockSpec((TB, M_pad), lambda i, k: (i, 0)),
        ),
        compiler_params=pltpu.CompilerParams(
            dimension_semantics=("parallel", "arbitrary"),
            vmem_limit_bytes=48 * 1024 * 1024,
        ),
    )(q_pad, p_pad, qn_pad, pn_pad)

    scores = scores_padded[:B, :num_class]

    # TODO(synk): the reference euclidean_dist returns a 3-tuple of identical
    # distance tensors and `scores = -distances` on a tuple would raise in
    # torch; we return the intended tuple of three negated-distance tensors.
    return (scores, scores, scores)


if __name__ == "__main__":
    key = jax.random.PRNGKey(0)
    kq, ks = jax.random.split(key)

    B, C, H, W = 2, 4, 16, 16          # query: NCHW
    num_class = 5

    query = jax.random.normal(kq, (B, C, H, W), dtype=jnp.float32)
    support = jax.random.normal(ks, (num_class, B, C, H, W), dtype=jnp.float32)

    scores_tuple = protonet_forward(query, support)
    scores = jax.block_until_ready(scores_tuple[0])

    # Reference 1: same bf16 input rounding as the kernel (tight check of the
    # distance math / accumulation).
    q_flat = query.reshape(B, -1)
    s_flat = support.reshape(num_class, B, -1)
    protos = s_flat.mean(axis=1)
    q_b = q_flat.astype(jnp.bfloat16).astype(jnp.float32)
    p_b = protos.astype(jnp.bfloat16).astype(jnp.float32)
    ref_bf16 = -jnp.sum((q_b[:, None, :] - p_b[None, :, :]) ** 2, axis=2)

    # Reference 2: pure f32 semantics of the torch module (loose check; the
    # deliberate bf16 input cast changes numerics at the ~1e-2 relative level).
    ref_f32 = -jnp.sum((q_flat[:, None, :] - protos[None, :, :]) ** 2, axis=2)

    assert scores.shape == (B, num_class)
    assert jnp.allclose(scores, ref_bf16, rtol=1e-2, atol=1e-1), (
        "mismatch vs bf16-rounded reference")
    assert jnp.allclose(scores, ref_f32, rtol=5e-2, atol=2.0), (
        "mismatch vs f32 reference")

    print("KERNEL_OK")
</pallas_src>

<mosaic_0001>
module attributes {stable_mosaic.version = 11 : i64} {
  func.func @_protonet_scores_kernel(%arg0: i32, %arg1: i32, %arg2: memref<16x1024xbf16, #tpu.memory_space<vmem>>, %arg3: memref<1024x128xbf16, #tpu.memory_space<vmem>>, %arg4: memref<16x1xf32, #tpu.memory_space<vmem>>, %arg5: memref<1x128xf32, #tpu.memory_space<vmem>>, %arg6: memref<16x128xf32, #tpu.memory_space<vmem>>) attributes {dimension_semantics = [#tpu.dimension_semantics<parallel>, #tpu.dimension_semantics<arbitrary>], iteration_bounds = array<i64: 1, 1>, scalar_prefetch = 0 : i64, scratch_operands = 0 : i64, tpu.core_type = #tpu.core_type<tc>, window_params = [{transform_indices = @transform_0, window_bounds = array<i64: 16, 1024>}, {transform_indices = @transform_1, window_bounds = array<i64: 1024, 128>}, {transform_indices = @transform_2, window_bounds = array<i64: 16, 1>}, {pipeline_mode = #tpu.pipeline_mode<synchronous>, transform_indices = @transform_3, window_bounds = array<i64: 1, 128>}, {transform_indices = @transform_4, window_bounds = array<i64: 16, 128>}]} {
    %c0_i32 = arith.constant 0 : i32
    %0 = arith.cmpi eq, %arg1, %c0_i32 : i32
    %1 = arith.extui %0 : i1 to i32
    %c0_i32_0 = arith.constant 0 : i32
    %2 = arith.cmpi ne, %1, %c0_i32_0 : i32
    scf.if %2 {
      %cst_10 = arith.constant 0.000000e+00 : f32
      %12 = vector.broadcast %cst_10 : f32 to vector<16x128xf32>
      %c0_11 = arith.constant 0 : index
      %c0_12 = arith.constant 0 : index
      %13 = vector.load %arg6[%c0_11, %c0_12] : memref<16x128xf32, #tpu.memory_space<vmem>>, vector<16x128xf32>
      tpu.vector_store %arg6[%c0_11, %c0_12], %12 {strides = array<i32>} : memref<16x128xf32, #tpu.memory_space<vmem>>, vector<16x128xf32>,
    } else {
    }
    %c0 = arith.constant 0 : index
    %c0_1 = arith.constant 0 : index
    %3 = vector.load %arg6[%c0, %c0_1] : memref<16x128xf32, #tpu.memory_space<vmem>>, vector<16x128xf32>
    %c0_2 = arith.constant 0 : index
    %c0_3 = arith.constant 0 : index
    %4 = vector.load %arg2[%c0_2, %c0_3] : memref<16x1024xbf16, #tpu.memory_space<vmem>>, vector<16x1024xbf16>
    %c0_4 = arith.constant 0 : index
    %c0_5 = arith.constant 0 : index
    %5 = vector.load %arg3[%c0_4, %c0_5] : memref<1024x128xbf16, #tpu.memory_space<vmem>>, vector<1024x128xbf16>
    %cst = arith.constant dense<0.000000e+00> : vector<16x128xf32>
    %6 = tpu.matmul %4, %5, %cst {dimension_numbers = #tpu.dot_dimension_numbers<[1], [0], [0], [1], [0, 0, 1, 1], [], []>} : vector<16x1024xbf16>, vector<1024x128xbf16>, vector<16x128xf32> -> vector<16x128xf32>
    %7 = arith.addf %3, %6 : vector<16x128xf32>
    %c0_6 = arith.constant 0 : index
    %c0_7 = arith.constant 0 : index
    %8 = vector.load %arg6[%c0_6, %c0_7] : memref<16x128xf32, #tpu.memory_space<vmem>>, vector<16x128xf32>
    tpu.vector_store %arg6[%c0_6, %c0_7], %7 {strides = array<i32>} : memref<16x128xf32, #tpu.memory_space<vmem>>, vector<16x128xf32>,
    %c0_i32_8 = arith.constant 0 : i32
    %9 = arith.cmpi eq, %arg1, %c0_i32_8 : i32
    %10 = arith.extui %9 : i1 to i32
    %c0_i32_9 = arith.constant 0 : i32
    %11 = arith.cmpi ne, %10, %c0_i32_9 : i32
    scf.if %11 {
      %c0_10 = arith.constant 0 : index
      %c0_11 = arith.constant 0 : index
      %12 = vector.load %arg4[%c0_10, %c0_11] : memref<16x1xf32, #tpu.memory_space<vmem>>, vector<16x1xf32>
      %c0_12 = arith.constant 0 : index
      %c0_13 = arith.constant 0 : index
      %13 = vector.load %arg5[%c0_12, %c0_13] : memref<1x128xf32, #tpu.memory_space<vmem>>, vector<1x128xf32>
      %14 = vector.broadcast %12 : vector<16x1xf32> to vector<16x128xf32>
      %15 = vector.broadcast %13 : vector<1x128xf32> to vector<16x128xf32>
      %16 = arith.addf %14, %15 : vector<16x128xf32>
      %c0_14 = arith.constant 0 : index
      %c0_15 = arith.constant 0 : index
      %17 = vector.load %arg6[%c0_14, %c0_15] : memref<16x128xf32, #tpu.memory_space<vmem>>, vector<16x128xf32>
      %cst_16 = arith.constant 2.000000e+00 : f32
      %18 = vector.broadcast %cst_16 : f32 to vector<16x128xf32>
      %19 = arith.mulf %18, %17 : vector<16x128xf32>
      %20 = arith.subf %16, %19 : vector<16x128xf32>
      %cst_17 = arith.constant 0.000000e+00 : f32
      %21 = vector.broadcast %cst_17 : f32 to vector<16x128xf32>
      %22 = arith.maximumf %20, %21 : vector<16x128xf32>
      %cst_18 = arith.constant 0.000000e+00 : f32
      %23 = vector.broadcast %cst_18 : f32 to vector<16x128xf32>
      %24 = arith.subf %23, %22 : vector<16x128xf32>
      %c0_19 = arith.constant 0 : index
      %c0_20 = arith.constant 0 : index
      %25 = vector.load %arg6[%c0_19, %c0_20] : memref<16x128xf32, #tpu.memory_space<vmem>>, vector<16x128xf32>
      tpu.vector_store %arg6[%c0_19, %c0_20], %24 {strides = array<i32>} : memref<16x128xf32, #tpu.memory_space<vmem>>, vector<16x128xf32>,
    } else {
    }
    return
  }
  func.func @transform_0(%arg0: i32, %arg1: i32) -> (i32, i32) {
    %c0_i32 = arith.constant 0 : i32
    return %arg0, %arg1 : i32, i32
  }
  func.func @transform_1(%arg0: i32, %arg1: i32) -> (i32, i32) {
    %c0_i32 = arith.constant 0 : i32
    %c0_i32_0 = arith.constant 0 : i32
    return %arg1, %c0_i32 : i32, i32
  }
  func.func @transform_2(%arg0: i32, %arg1: i32) -> (i32, i32) {
    %c0_i32 = arith.constant 0 : i32
    %c0_i32_0 = arith.constant 0 : i32
    return %arg0, %c0_i32 : i32, i32
  }
  func.func @transform_3(%arg0: i32, %arg1: i32) -> (i32, i32) {
    %c0_i32 = arith.constant 0 : i32
    %c0_i32_0 = arith.constant 0 : i32
    %c0_i32_1 = arith.constant 0 : i32
    return %c0_i32, %c0_i32_0 : i32, i32
  }
  func.func @transform_4(%arg0: i32, %arg1: i32) -> (i32, i32) {
    %c0_i32 = arith.constant 0 : i32
    %c0_i32_0 = arith.constant 0 : i32
    return %arg0, %c0_i32 : i32, i32
  }
}

</mosaic_0001>

<llo_original>
// kernel: tpu_custom_call.1
$region0: #{tpu_custom_call.1}
  #allocation0 [shape = 'u32[]', space=smem, size = 0x4, offset = 0x4, fixed_abs, tag = 'smem constant byte address 0x4 - core index']
  #allocation1 [shape = 'u32[144,128]{1,0:T(1,128)}', space=vmem, size = 0x12000, scoped, tag = 'internal scratch']
  %s0 = inlined_call_operand.hbm [shape: bf16[16,1024], index: 0, kind: input, shape index: {}]
  %s1 = inlined_call_operand.hbm [shape: bf16[1024,128], index: 1, kind: input, shape index: {}]
  %s2 = inlined_call_operand.vmem [shape: f32[16,1], index: 2, kind: input, shape index: {}]
  %s3 = inlined_call_operand.vmem [shape: f32[1,128], index: 3, kind: input, shape index: {}]
  %s4 = inlined_call_operand.hbm [shape: f32[16,128], index: 4, kind: output, shape index: {}]
  %s5 = sld [smem:[#allocation0]]
  $region42: #{tpu_custom_call.1} parent=0
    _
  %s7 = ssub.s32 1, %s5
  %s8 = scalar_select 0, %s7, %s5
  $region1: #{tpu_custom_call.1} parent=0
    #allocation2 [shape = 'u8[32768]{0}', space=vmem, size = 0x8000, scoped, tag = 'input window, operand 0, single buffered']
    #allocation3 [shape = 's32[1]{0}', space=sflag, size = 0x4, scoped, tag = 'scoped memory for tpu_custom_call.1']
    #allocation4 [shape = 's32[1]{0}', space=sflag, size = 0x4, scoped, tag = 'scoped memory for tpu_custom_call.1']
    #allocation5 [shape = 'u8[262144]{0}', space=vmem, size = 0x40000, scoped, tag = 'input window, operand 1, single buffered']
    #allocation6 [shape = 's32[1]{0}', space=sflag, size = 0x4, scoped, tag = 'scoped memory for tpu_custom_call.1']
    #allocation7 [shape = 'u8[8192]{0}', space=vmem, size = 0x2000, scoped, tag = 'output window, operand 0, single buffered']
    %9 = vsyncpa [#allocation3], 0
    %10 = vsyncpa [#allocation6], 0
    %11 = vsyncpa [#allocation4], 0
    // Predicated region
    $region2: #{tpu_custom_call.1} parent=1 // pred_check
      _
    $region3: #{tpu_custom_call.1} parent=1 // pred_check_branch
      %13 = sbr.rel (0) target = $region5
    $region4: #{tpu_custom_call.1} parent=1 // pred_region
      %s15 = ssub.s32 1024, 1024
      %16 = vsyncadd [#allocation3], %s15
      %s17 = sshll.u32 [#allocation2], 4
      %s18 = int_to_ptr.vmem [resolvable:$true] %s17
      %23 = dma.hbm_to_vmem [thread:$0]  %s0, 1024, %s18, [#allocation3], 512, 512, 32
    $region5: #{tpu_custom_call.1} parent=1 // pred_fallthru
      _
    // Predicated region
    $region6: #{tpu_custom_call.1} parent=1 // pred_check
      _
    $region7: #{tpu_custom_call.1} parent=1 // pred_check_branch
      %25 = sbr.rel (0) target = $region9
    $region8: #{tpu_custom_call.1} parent=1 // pred_region
      %s27 = ssub.s32 8192, 8192
      %28 = vsyncadd [#allocation6], %s27
      %s29 = sshll.u32 [#allocation5], 4
      %s30 = int_to_ptr.vmem [resolvable:$true] %s29
      %35 = dma.hbm_to_vmem [thread:$0]  %s1, 8192, %s30, [#allocation6], 64, 64, 4
    $region9: #{tpu_custom_call.1} parent=1 // pred_fallthru
      _
    // Predicated region
    $region10: #{tpu_custom_call.1} parent=1 // pred_check
      _
    $region11: #{tpu_custom_call.1} parent=1 // pred_check_branch
      %37 = sbr.rel (0) target = $region13
    $region12: #{tpu_custom_call.1} parent=1 // pred_region
      _
    $region13: #{tpu_custom_call.1} parent=1 // pred_fallthru
      _
    // Predicated region
    $region14: #{tpu_custom_call.1} parent=1 // pred_check
      _
    $region15: #{tpu_custom_call.1} parent=1 // pred_check_branch
      %39 = sbr.rel (0) target = $region17
    $region16: #{tpu_custom_call.1} parent=1 // pred_region
      _
    $region17: #{tpu_custom_call.1} parent=1 // pred_fallthru
      _
    // Predicated region
    $region18: #{tpu_custom_call.1} parent=1 // pred_check
      _
    $region19: #{tpu_custom_call.1} parent=1 // pred_check_branch
      %41 = sbr.rel (0) target = $region21
    $region20: #{tpu_custom_call.1} parent=1 // pred_region
      %42 = dma.done [#allocation3], 1024
    $region21: #{tpu_custom_call.1} parent=1 // pred_fallthru
      _
    // Predicated region
    $region22: #{tpu_custom_call.1} parent=1 // pred_check
      _
    $region23: #{tpu_custom_call.1} parent=1 // pred_check_branch
      %44 = sbr.rel (0) target = $region25
    $region24: #{tpu_custom_call.1} parent=1 // pred_region
      %45 = dma.done [#allocation6], 8192
    $region25: #{tpu_custom_call.1} parent=1 // pred_fallthru
      _
    %p47 = scmp.eq.s32.totalorder 0, 0
    // Predicated region
    $region26: #{tpu_custom_call.1} parent=1 // pred_check
      %p48 = pneg %p47
    $region27: #{tpu_custom_call.1} parent=1 // pred_check_branch
      %50 = sbr.rel (%p48) target = $region29
    $region28: #{tpu_custom_call.1} parent=1 // pred_region
      %51 = vst [vmem:[#allocation7] sm:$0xff] 0.0
      %52 = vst [vmem:[#allocation7 + $0x8] sm:$0xff] 0.0
    $region29: #{tpu_custom_call.1} parent=1 // pred_fallthru
      _
    %v53 = vld [vmem:[#allocation7] sm:$0xff]
    %v54 = vld [vmem:[#allocation7 + $0x8] sm:$0xff]
    %v55 = vld [vmem:[#allocation2] sm:$0xff]
    %v56 = vld [vmem:[#allocation2 + $0x8] sm:$0xff]
    %v57 = vld [vmem:[#allocation2 + $0x10] sm:$0xff]
    %v58 = vld [vmem:[#allocation2 + $0x18] sm:$0xff]
    %v59 = vld [vmem:[#allocation2 + $0x20] sm:$0xff]
    %v60 = vld [vmem:[#allocation2 + $0x28] sm:$0xff]
    %v61 = vld [vmem:[#allocation2 + $0x30] sm:$0xff]
    %v62 = vld [vmem:[#allocation2 + $0x38] sm:$0xff]
    %v63 = vld [vmem:[#allocation5] sm:$0xf]
    %v64 = vld [vmem:[#allocation5 + $0x4] sm:$0xf]
    %v65 = vld [vmem:[#allocation5 + $0x8] sm:$0xf]
    %v66 = vld [vmem:[#allocation5 + $0xc] sm:$0xf]
    %v67 = vld [vmem:[#allocation5 + $0x10] sm:$0xf]
    %v68 = vld [vmem:[#allocation5 + $0x14] sm:$0xf]
    %v69 = vld [vmem:[#allocation5 + $0x18] sm:$0xf]
    %v70 = vld [vmem:[#allocation5 + $0x1c] sm:$0xf]
    %v71 = vld [vmem:[#allocation5 + $0x20] sm:$0xf]
    %v72 = vld [vmem:[#allocation5 + $0x24] sm:$0xf]
    %v73 = vld [vmem:[#allocation5 + $0x28] sm:$0xf]
    %v74 = vld [vmem:[#allocation5 + $0x2c] sm:$0xf]
    %v75 = vld [vmem:[#allocation5 + $0x30] sm:$0xf]
    %v76 = vld [vmem:[#allocation5 + $0x34] sm:$0xf]
    %v77 = vld [vmem:[#allocation5 + $0x38] sm:$0xf]
    %v78 = vld [vmem:[#allocation5 + $0x3c] sm:$0xf]
    %v79 = vld [vmem:[#allocation5 + $0x40] sm:$0xf]
    %v80 = vld [vmem:[#allocation5 + $0x44] sm:$0xf]
    %v81 = vld [vmem:[#allocation5 + $0x48] sm:$0xf]
    %v82 = vld [vmem:[#allocation5 + $0x4c] sm:$0xf]
    %v83 = vld [vmem:[#allocation5 + $0x50] sm:$0xf]
    %v84 = vld [vmem:[#allocation5 + $0x54] sm:$0xf]
    %v85 = vld [vmem:[#allocation5 + $0x58] sm:$0xf]
    %v86 = vld [vmem:[#allocation5 + $0x5c] sm:$0xf]
    %v87 = vld [vmem:[#allocation5 + $0x60] sm:$0xf]
    %v88 = vld [vmem:[#allocation5 + $0x64] sm:$0xf]
    %v89 = vld [vmem:[#allocation5 + $0x68] sm:$0xf]
    %v90 = vld [vmem:[#allocation5 + $0x6c] sm:$0xf]
    %v91 = vld [vmem:[#allocation5 + $0x70] sm:$0xf]
    %v92 = vld [vmem:[#allocation5 + $0x74] sm:$0xf]
    %v93 = vld [vmem:[#allocation5 + $0x78] sm:$0xf]
    %v94 = vld [vmem:[#allocation5 + $0x7c] sm:$0xf]
    %v95 = vld [vmem:[#allocation5 + $0x80] sm:$0xf]
    %v96 = vld [vmem:[#allocation5 + $0x84] sm:$0xf]
    %v97 = vld [vmem:[#allocation5 + $0x88] sm:$0xf]
    %v98 = vld [vmem:[#allocation5 + $0x8c] sm:$0xf]
    %v99 = vld [vmem:[#allocation5 + $0x90] sm:$0xf]
    %v100 = vld [vmem:[#allocation5 + $0x94] sm:$0xf]
    %v101 = vld [vmem:[#allocation5 + $0x98] sm:$0xf]
    %v102 = vld [vmem:[#allocation5 + $0x9c] sm:$0xf]
    %v103 = vld [vmem:[#allocation5 + $0xa0] sm:$0xf]
    %v104 = vld [vmem:[#allocation5 + $0xa4] sm:$0xf]
    %v105 = vld [vmem:[#allocation5 + $0xa8] sm:$0xf]
    %v106 = vld [vmem:[#allocation5 + $0xac] sm:$0xf]
    %v107 = vld [vmem:[#allocation5 + $0xb0] sm:$0xf]
    %v108 = vld [vmem:[#allocation5 + $0xb4] sm:$0xf]
    %v109 = vld [vmem:[#allocation5 + $0xb8] sm:$0xf]
    %v110 = vld [vmem:[#allocation5 + $0xbc] sm:$0xf]
    %v111 = vld [vmem:[#allocation5 + $0xc0] sm:$0xf]
    %v112 = vld [vmem:[#allocation5 + $0xc4] sm:$0xf]
    %v113 = vld [vmem:[#allocation5 + $0xc8] sm:$0xf]
    %v114 = vld [vmem:[#allocation5 + $0xcc] sm:$0xf]
    %v115 = vld [vmem:[#allocation5 + $0xd0] sm:$0xf]
    %v116 = vld [vmem:[#allocation5 + $0xd4] sm:$0xf]
    %v117 = vld [vmem:[#allocation5 + $0xd8] sm:$0xf]
    %v118 = vld [vmem:[#allocation5 + $0xdc] sm:$0xf]
    %v119 = vld [vmem:[#allocation5 + $0xe0] sm:$0xf]
    %v120 = vld [vmem:[#allocation5 + $0xe4] sm:$0xf]
    %v121 = vld [vmem:[#allocation5 + $0xe8] sm:$0xf]
    %v122 = vld [vmem:[#allocation5 + $0xec] sm:$0xf]
    %v123 = vld [vmem:[#allocation5 + $0xf0] sm:$0xf]
    %v124 = vld [vmem:[#allocation5 + $0xf4] sm:$0xf]
    %v125 = vld [vmem:[#allocation5 + $0xf8] sm:$0xf]
    %v126 = vld [vmem:[#allocation5 + $0xfc] sm:$0xf]
    %v127 = vld [vmem:[#allocation5 + $0x100] sm:$0xf]
    %v128 = vld [vmem:[#allocation5 + $0x104] sm:$0xf]
    %v129 = vld [vmem:[#allocation5 + $0x108] sm:$0xf]
    %v130 = vld [vmem:[#allocation5 + $0x10c] sm:$0xf]
    %v131 = vld [vmem:[#allocation5 + $0x110] sm:$0xf]
    %v132 = vld [vmem:[#allocation5 + $0x114] sm:$0xf]
    %v133 = vld [vmem:[#allocation5 + $0x118] sm:$0xf]
    %v134 = vld [vmem:[#allocation5 + $0x11c] sm:$0xf]
    %v135 = vld [vmem:[#allocation5 + $0x120] sm:$0xf]
    %v136 = vld [vmem:[#allocation5 + $0x124] sm:$0xf]
    %v137 = vld [vmem:[#allocation5 + $0x128] sm:$0xf]
    %v138 = vld [vmem:[#allocation5 + $0x12c] sm:$0xf]
    %v139 = vld [vmem:[#allocation5 + $0x130] sm:$0xf]
    %v140 = vld [vmem:[#allocation5 + $0x134] sm:$0xf]
    %v141 = vld [vmem:[#allocation5 + $0x138] sm:$0xf]
    %v142 = vld [vmem:[#allocation5 + $0x13c] sm:$0xf]
    %v143 = vld [vmem:[#allocation5 + $0x140] sm:$0xf]
    %v144 = vld [vmem:[#allocation5 + $0x144] sm:$0xf]
    %v145 = vld [vmem:[#allocation5 + $0x148] sm:$0xf]
    %v146 = vld [vmem:[#allocation5 + $0x14c] sm:$0xf]
    %v147 = vld [vmem:[#allocation5 + $0x150] sm:$0xf]
    %v148 = vld [vmem:[#allocation5 + $0x154] sm:$0xf]
    %v149 = vld [vmem:[#allocation5 + $0x158] sm:$0xf]
    %v150 = vld [vmem:[#allocation5 + $0x15c] sm:$0xf]
    %v151 = vld [vmem:[#allocation5 + $0x160] sm:$0xf]
    %v152 = vld [vmem:[#allocation5 + $0x164] sm:$0xf]
    %v153 = vld [vmem:[#allocation5 + $0x168] sm:$0xf]
    %v154 = vld [vmem:[#allocation5 + $0x16c] sm:$0xf]
    %v155 = vld [vmem:[#allocation5 + $0x170] sm:$0xf]
    %v156 = vld [vmem:[#allocation5 + $0x174] sm:$0xf]
    %v157 = vld [vmem:[#allocation5 + $0x178] sm:$0xf]
    %v158 = vld [vmem:[#allocation5 + $0x17c] sm:$0xf]
    %v159 = vld [vmem:[#allocation5 + $0x180] sm:$0xf]
    %v160 = vld [vmem:[#allocation5 + $0x184] sm:$0xf]
    %v161 = vld [vmem:[#allocation5 + $0x188] sm:$0xf]
    %v162 = vld [vmem:[#allocation5 + $0x18c] sm:$0xf]
    %v163 = vld [vmem:[#allocation5 + $0x190] sm:$0xf]
    %v164 = vld [vmem:[#allocation5 + $0x194] sm:$0xf]
    %v165 = vld [vmem:[#allocation5 + $0x198] sm:$0xf]
    %v166 = vld [vmem:[#allocation5 + $0x19c] sm:$0xf]
    %v167 = vld [vmem:[#allocation5 + $0x1a0] sm:$0xf]
    %v168 = vld [vmem:[#allocation5 + $0x1a4] sm:$0xf]
    %v169 = vld [vmem:[#allocation5 + $0x1a8] sm:$0xf]
    %v170 = vld [vmem:[#allocation5 + $0x1ac] sm:$0xf]
    %v171 = vld [vmem:[#allocation5 + $0x1b0] sm:$0xf]
    %v172 = vld [vmem:[#allocation5 + $0x1b4] sm:$0xf]
    %v173 = vld [vmem:[#allocation5 + $0x1b8] sm:$0xf]
    %v174 = vld [vmem:[#allocation5 + $0x1bc] sm:$0xf]
    %v175 = vld [vmem:[#allocation5 + $0x1c0] sm:$0xf]
    %v176 = vld [vmem:[#allocation5 + $0x1c4] sm:$0xf]
    %v177 = vld [vmem:[#allocation5 + $0x1c8] sm:$0xf]
    %v178 = vld [vmem:[#allocation5 + $0x1cc] sm:$0xf]
    %v179 = vld [vmem:[#allocation5 + $0x1d0] sm:$0xf]
    %v180 = vld [vmem:[#allocation5 + $0x1d4] sm:$0xf]
    %v181 = vld [vmem:[#allocation5 + $0x1d8] sm:$0xf]
    %v182 = vld [vmem:[#allocation5 + $0x1dc] sm:$0xf]
    %v183 = vld [vmem:[#allocation5 + $0x1e0] sm:$0xf]
    %v184 = vld [vmem:[#allocation5 + $0x1e4] sm:$0xf]
    %v185 = vld [vmem:[#allocation5 + $0x1e8] sm:$0xf]
    %v186 = vld [vmem:[#allocation5 + $0x1ec] sm:$0xf]
    %v187 = vld [vmem:[#allocation5 + $0x1f0] sm:$0xf]
    %v188 = vld [vmem:[#allocation5 + $0x1f4] sm:$0xf]
    %v189 = vld [vmem:[#allocation5 + $0x1f8] sm:$0xf]
    %v190 = vld [vmem:[#allocation5 + $0x1fc] sm:$0xf]
    %v199 = vunpack.c.l.b16 %v55
    %v200 = vunpack.c.h.b16 %v55
    %v201 = vunpack.c.l.b16 %v56
    %v202 = vunpack.c.h.b16 %v56
    %v203 = vunpack.c.l.b16 %v57
    %v204 = vunpack.c.h.b16 %v57
    %v205 = vunpack.c.l.b16 %v58
    %v206 = vunpack.c.h.b16 %v58
    %v207 = vunpack.c.l.b16 %v59
    %v208 = vunpack.c.h.b16 %v59
    %v209 = vunpack.c.l.b16 %v60
    %v210 = vunpack.c.h.b16 %v60
    %v211 = vunpack.c.l.b16 %v61
    %v212 = vunpack.c.h.b16 %v61
    %v213 = vunpack.c.l.b16 %v62
    %v214 = vunpack.c.h.b16 %v62
    %v215 = vpack.c.b16 %v207, %v199
    %v216 = vpack.c.b16 %v208, %v200
    %v217 = vpack.c.b16 %v209, %v201
    %v218 = vpack.c.b16 %v210, %v202
    %v219 = vpack.c.b16 %v211, %v203
    %v220 = vpack.c.b16 %v212, %v204
    %v221 = vpack.c.b16 %v213, %v205
    %v222 = vpack.c.b16 %v214, %v206
    %v359 = vunpack.c.l.b16 %v63
    %v360 = vunpack.c.l.b16 %v64
    %v361 = vunpack.c.l.b16 %v65
    %v362 = vunpack.c.l.b16 %v66
    %v363 = vunpack.c.l.b16 %v67
    %v364 = vunpack.c.l.b16 %v68
    %v365 = vunpack.c.l.b16 %v69
    %v366 = vunpack.c.l.b16 %v70
    %v367 = vunpack.c.l.b16 %v71
    %v368 = vunpack.c.l.b16 %v72
    %v369 = vunpack.c.l.b16 %v73
    %v370 = vunpack.c.l.b16 %v74
    %v371 = vunpack.c.l.b16 %v75
    %v372 = vunpack.c.l.b16 %v76
    %v373 = vunpack.c.l.b16 %v77
    %v374 = vunpack.c.l.b16 %v78
    %v375 = vunpack.c.l.b16 %v79
    %v376 = vunpack.c.l.b16 %v80
    %v377 = vunpack.c.l.b16 %v81
    %v378 = vunpack.c.l.b16 %v82
    %v379 = vunpack.c.l.b16 %v83
    %v380 = vunpack.c.l.b16 %v84
    %v381 = vunpack.c.l.b16 %v85
    %v382 = vunpack.c.l.b16 %v86
    %v383 = vunpack.c.l.b16 %v87
    %v384 = vunpack.c.l.b16 %v88
    %v385 = vunpack.c.l.b16 %v89
    %v386 = vunpack.c.l.b16 %v90
    %v387 = vunpack.c.l.b16 %v91
    %v388 = vunpack.c.l.b16 %v92
    %v389 = vunpack.c.l.b16 %v93
    %v390 = vunpack.c.l.b16 %v94
    %v391 = vunpack.c.l.b16 %v95
    %v392 = vunpack.c.l.b16 %v96
    %v393 = vunpack.c.l.b16 %v97
    %v394 = vunpack.c.l.b16 %v98
    %v395 = vunpack.c.l.b16 %v99
    %v396 = vunpack.c.l.b16 %v100
    %v397 = vunpack.c.l.b16 %v101
    %v398 = vunpack.c.l.b16 %v102
    %v399 = vunpack.c.l.b16 %v103
    %v400 = vunpack.c.l.b16 %v104
    %v401 = vunpack.c.l.b16 %v105
    %v402 = vunpack.c.l.b16 %v106
    %v403 = vunpack.c.l.b16 %v107
    %v404 = vunpack.c.l.b16 %v108
    %v405 = vunpack.c.l.b16 %v109
    %v406 = vunpack.c.l.b16 %v110
    %v407 = vunpack.c.l.b16 %v111
    %v408 = vunpack.c.l.b16 %v112
    %v409 = vunpack.c.l.b16 %v113
    %v410 = vunpack.c.l.b16 %v114
    %v411 = vunpack.c.l.b16 %v115
    %v412 = vunpack.c.l.b16 %v116
    %v413 = vunpack.c.l.b16 %v117
    %v414 = vunpack.c.l.b16 %v118
    %v415 = vunpack.c.l.b16 %v119
    %v416 = vunpack.c.l.b16 %v120
    %v417 = vunpack.c.l.b16 %v121
    %v418 = vunpack.c.l.b16 %v122
    %v419 = vunpack.c.l.b16 %v123
    %v420 = vunpack.c.l.b16 %v124
    %v421 = vunpack.c.l.b16 %v125
    %v422 = vunpack.c.l.b16 %v126
    %v423 = vunpack.c.l.b16 %v127
    %v424 = vunpack.c.l.b16 %v128
    %v425 = vunpack.c.l.b16 %v129
    %v426 = vunpack.c.l.b16 %v130
    %v427 = vunpack.c.l.b16 %v131
    %v428 = vunpack.c.l.b16 %v132
    %v429 = vunpack.c.l.b16 %v133
    %v430 = vunpack.c.l.b16 %v134
    %v431 = vunpack.c.l.b16 %v135
    %v432 = vunpack.c.l.b16 %v136
    %v433 = vunpack.c.l.b16 %v137
    %v434 = vunpack.c.l.b16 %v138
    %v435 = vunpack.c.l.b16 %v139
    %v436 = vunpack.c.l.b16 %v140
    %v437 = vunpack.c.l.b16 %v141
    %v438 = vunpack.c.l.b16 %v142
    %v439 = vunpack.c.l.b16 %v143
    %v440 = vunpack.c.l.b16 %v144
    %v441 = vunpack.c.l.b16 %v145
    %v442 = vunpack.c.l.b16 %v146
    %v443 = vunpack.c.l.b16 %v147
    %v444 = vunpack.c.l.b16 %v148
    %v445 = vunpack.c.l.b16 %v149
    %v446 = vunpack.c.l.b16 %v150
    %v447 = vunpack.c.l.b16 %v151
    %v448 = vunpack.c.l.b16 %v152
    %v449 = vunpack.c.l.b16 %v153
    %v450 = vunpack.c.l.b16 %v154
    %v451 = vunpack.c.l.b16 %v155
    %v452 = vunpack.c.l.b16 %v156
    %v453 = vunpack.c.l.b16 %v157
    %v454 = vunpack.c.l.b16 %v158
    %v455 = vunpack.c.l.b16 %v159
    %v456 = vunpack.c.l.b16 %v160
    %v457 = vunpack.c.l.b16 %v161
    %v458 = vunpack.c.l.b16 %v162
    %v459 = vunpack.c.l.b16 %v163
    %v460 = vunpack.c.l.b16 %v164
    %v461 = vunpack.c.l.b16 %v165
    %v462 = vunpack.c.l.b16 %v166
    %v463 = vunpack.c.l.b16 %v167
    %v464 = vunpack.c.l.b16 %v168
    %v465 = vunpack.c.l.b16 %v169
    %v466 = vunpack.c.l.b16 %v170
    %v467 = vunpack.c.l.b16 %v171
    %v468 = vunpack.c.l.b16 %v172
    %v469 = vunpack.c.l.b16 %v173
    %v470 = vunpack.c.l.b16 %v174
    %v471 = vunpack.c.l.b16 %v175
    %v472 = vunpack.c.l.b16 %v176
    %v473 = vunpack.c.l.b16 %v177
    %v474 = vunpack.c.l.b16 %v178
    %v475 = vunpack.c.l.b16 %v179
    %v476 = vunpack.c.l.b16 %v180
    %v477 = vunpack.c.l.b16 %v181
    %v478 = vunpack.c.l.b16 %v182
    %v479 = vunpack.c.l.b16 %v183
    %v480 = vunpack.c.l.b16 %v184
    %v481 = vunpack.c.l.b16 %v185
    %v482 = vunpack.c.l.b16 %v186
    %v483 = vunpack.c.l.b16 %v187
    %v484 = vunpack.c.l.b16 %v188
    %v485 = vunpack.c.l.b16 %v189
    %v486 = vunpack.c.l.b16 %v190
    %v487 = vpack.c.b16 %v360, %v359
    %v488 = vpack.c.b16 %v362, %v361
    %v489 = vpack.c.b16 %v364, %v363
    %v490 = vpack.c.b16 %v366, %v365
    %v491 = vpack.c.b16 %v368, %v367
    %v492 = vpack.c.b16 %v370, %v369
    %v493 = vpack.c.b16 %v372, %v371
    %v494 = vpack.c.b16 %v374, %v373
    %v495 = vpack.c.b16 %v376, %v375
    %v496 = vpack.c.b16 %v378, %v377
    %v497 = vpack.c.b16 %v380, %v379
    %v498 = vpack.c.b16 %v382, %v381
    %v499 = vpack.c.b16 %v384, %v383
    %v500 = vpack.c.b16 %v386, %v385
    %v501 = vpack.c.b16 %v388, %v387
    %v502 = vpack.c.b16 %v390, %v389
    %v503 = vpack.c.b16 %v392, %v391
    %v504 = vpack.c.b16 %v394, %v393
    %v505 = vpack.c.b16 %v396, %v395
    %v506 = vpack.c.b16 %v398, %v397
    %v507 = vpack.c.b16 %v400, %v399
    %v508 = vpack.c.b16 %v402, %v401
    %v509 = vpack.c.b16 %v404, %v403
    %v510 = vpack.c.b16 %v406, %v405
    %v511 = vpack.c.b16 %v408, %v407
    %v512 = vpack.c.b16 %v410, %v409
    %v513 = vpack.c.b16 %v412, %v411
    %v514 = vpack.c.b16 %v414, %v413
    %v515 = vpack.c.b16 %v416, %v415
    %v516 = vpack.c.b16 %v418, %v417
    %v517 = vpack.c.b16 %v420, %v419
    %v518 = vpack.c.b16 %v422, %v421
    %v519 = vpack.c.b16 %v424, %v423
    %v520 = vpack.c.b16 %v426, %v425
    %v521 = vpack.c.b16 %v428, %v427
    %v522 = vpack.c.b16 %v430, %v429
    %v523 = vpack.c.b16 %v432, %v431
    %v524 = vpack.c.b16 %v434, %v433
    %v525 = vpack.c.b16 %v436, %v435
    %v526 = vpack.c.b16 %v438, %v437
    %v527 = vpack.c.b16 %v440, %v439
    %v528 = vpack.c.b16 %v442, %v441
    %v529 = vpack.c.b16 %v444, %v443
    %v530 = vpack.c.b16 %v446, %v445
    %v531 = vpack.c.b16 %v448, %v447
    %v532 = vpack.c.b16 %v450, %v449
    %v533 = vpack.c.b16 %v452, %v451
    %v534 = vpack.c.b16 %v454, %v453
    %v535 = vpack.c.b16 %v456, %v455
    %v536 = vpack.c.b16 %v458, %v457
    %v537 = vpack.c.b16 %v460, %v459
    %v538 = vpack.c.b16 %v462, %v461
    %v539 = vpack.c.b16 %v464, %v463
    %v540 = vpack.c.b16 %v466, %v465
    %v541 = vpack.c.b16 %v468, %v467
    %v542 = vpack.c.b16 %v470, %v469
    %v543 = vpack.c.b16 %v472, %v471
    %v544 = vpack.c.b16 %v474, %v473
    %v545 = vpack.c.b16 %v476, %v475
    %v546 = vpack.c.b16 %v478, %v477
    %v547 = vpack.c.b16 %v480, %v479
    %v548 = vpack.c.b16 %v482, %v481
    %v549 = vpack.c.b16 %v484, %v483
    %v550 = vpack.c.b16 %v486, %v485
    %615 = vmatprep.subr.bf16.mxu0 0
    %616 = vmatpush1.bf16.msra.mxu0 %v487
    %617 = vmatprep.subr.bf16.mxu0 0
    %618 = vmatpush1.bf16.msra.mxu0 %v488
    %619 = vmatprep.subr.bf16.mxu0 0
    %620 = vmatpush1.bf16.msra.mxu0 %v489
    %621 = vmatprep.subr.bf16.mxu0 0
    %622 = vmatpush1.bf16.msra.mxu0 %v490
    %623 = vmatprep.subr.bf16.mxu0 0
    %624 = vmatpush1.bf16.msra.mxu0 %v491
    %625 = vmatprep.subr.bf16.mxu0 0
    %626 = vmatpush1.bf16.msra.mxu0 %v492
    %627 = vmatprep.subr.bf16.mxu0 0
    %628 = vmatpush1.bf16.msra.mxu0 %v493
    %629 = vmatprep.subr.bf16.mxu0 0
    %630 = vmatpush1.bf16.msra.mxu0 %v494
    %631 = vmatprep.subr.bf16.mxu0 0
    %632 = vmatpush1.bf16.msra.mxu0 %v495
    %633 = vmatprep.subr.bf16.mxu0 0
    %634 = vmatpush1.bf16.msra.mxu0 %v496
    %635 = vmatprep.subr.bf16.mxu0 0
    %636 = vmatpush1.bf16.msra.mxu0 %v497
    %637 = vmatprep.subr.bf16.mxu0 0
    %638 = vmatpush1.bf16.msra.mxu0 %v498
    %639 = vmatprep.subr.bf16.mxu0 0
    %640 = vmatpush1.bf16.msra.mxu0 %v499
    %641 = vmatprep.subr.bf16.mxu0 0
    %642 = vmatpush1.bf16.msra.mxu0 %v500
    %643 = vmatprep.subr.bf16.mxu0 0
    %644 = vmatpush1.bf16.msra.mxu0 %v501
    %645 = vmatprep.subr.bf16.mxu0 0
    %646 = vmatpush1.bf16.msra.mxu0 %v502
    %647 = vmatprep.mubr.bf16.mxu0 %v216
    %648 = vmatmul.mubr.bf16.gmra.mrb[0].mxu0 %v215
    %v649 = vpop.f32.mrb[0].mxu0
    %v650 = vadd.f32 0.0, %v649
    %v651 = vpop.f32.mrb[0].mxu0
    %v652 = vpop.f32.mrb[0].mxu0
    %v653 = vadd.f32 0.0, %v652
    %v654 = vpop.f32.mrb[0].mxu0
    %655 = vdwg.mxu0
    %656 = vmatprep.subr.bf16.mxu0 0
    %657 = vmatpush1.bf16.msra.mxu0 %v503
    %658 = vmatprep.subr.bf16.mxu0 0
    %659 = vmatpush1.bf16.msra.mxu0 %v504
    %660 = vmatprep.subr.bf16.mxu0 0
    %661 = vmatpush1.bf16.msra.mxu0 %v505
    %662 = vmatprep.subr.bf16.mxu0 0
    %663 = vmatpush1.bf16.msra.mxu0 %v506
    %664 = vmatprep.subr.bf16.mxu0 0
    %665 = vmatpush1.bf16.msra.mxu0 %v507
    %666 = vmatprep.subr.bf16.mxu0 0
    %667 = vmatpush1.bf16.msra.mxu0 %v508
    %668 = vmatprep.subr.bf16.mxu0 0
    %669 = vmatpush1.bf16.msra.mxu0 %v509
    %670 = vmatprep.subr.bf16.mxu0 0
    %671 = vmatpush1.bf16.msra.mxu0 %v510
    %672 = vmatprep.subr.bf16.mxu0 0
    %673 = vmatpush1.bf16.msra.mxu0 %v511
    %674 = vmatprep.subr.bf16.mxu0 0
    %675 = vmatpush1.bf16.msra.mxu0 %v512
    %676 = vmatprep.subr.bf16.mxu0 0
    %677 = vmatpush1.bf16.msra.mxu0 %v513
    %678 = vmatprep.subr.bf16.mxu0 0
    %679 = vmatpush1.bf16.msra.mxu0 %v514
    %680 = vmatprep.subr.bf16.mxu0 0
    %681 = vmatpush1.bf16.msra.mxu0 %v515
    %682 = vmatprep.subr.bf16.mxu0 0
    %683 = vmatpush1.bf16.msra.mxu0 %v516
    %684 = vmatprep.subr.bf16.mxu0 0
    %685 = vmatpush1.bf16.msra.mxu0 %v517
    %686 = vmatprep.subr.bf16.mxu0 0
    %687 = vmatpush1.bf16.msra.mxu0 %v518
    %688 = vmatprep.mubr.bf16.mxu0 %v218
    %689 = vmatmul.mubr.bf16.gmra.mrb[0].mxu0 %v217
    %v690 = vpop.f32.mrb[0].mxu0
    %v691 = vadd.f32 %v650, %v690
    %v692 = vpop.f32.mrb[0].mxu0
    %v693 = vpop.f32.mrb[0].mxu0
    %v694 = vadd.f32 %v653, %v693
    %v695 = vpop.f32.mrb[0].mxu0
    %696 = vdwg.mxu0
    %697 = vmatprep.subr.bf16.mxu0 0
    %698 = vmatpush1.bf16.msra.mxu0 %v519
    %699 = vmatprep.subr.bf16.mxu0 0
    %700 = vmatpush1.bf16.msra.mxu0 %v520
    %701 = vmatprep.subr.bf16.mxu0 0
    %702 = vmatpush1.bf16.msra.mxu0 %v521
    %703 = vmatprep.subr.bf16.mxu0 0
    %704 = vmatpush1.bf16.msra.mxu0 %v522
    %705 = vmatprep.subr.bf16.mxu0 0
    %706 = vmatpush1.bf16.msra.mxu0 %v523
    %707 = vmatprep.subr.bf16.mxu0 0
    %708 = vmatpush1.bf16.msra.mxu0 %v524
    %709 = vmatprep.subr.bf16.mxu0 0
    %710 = vmatpush1.bf16.msra.mxu0 %v525
    %711 = vmatprep.subr.bf16.mxu0 0
    %712 = vmatpush1.bf16.msra.mxu0 %v526
    %713 = vmatprep.subr.bf16.mxu0 0
    %714 = vmatpush1.bf16.msra.mxu0 %v527
    %715 = vmatprep.subr.bf16.mxu0 0
    %716 = vmatpush1.bf16.msra.mxu0 %v528
    %717 = vmatprep.subr.bf16.mxu0 0
    %718 = vmatpush1.bf16.msra.mxu0 %v529
    %719 = vmatprep.subr.bf16.mxu0 0
    %720 = vmatpush1.bf16.msra.mxu0 %v530
    %721 = vmatprep.subr.bf16.mxu0 0
    %722 = vmatpush1.bf16.msra.mxu0 %v531
    %723 = vmatprep.subr.bf16.mxu0 0
    %724 = vmatpush1.bf16.msra.mxu0 %v532
    %725 = vmatprep.subr.bf16.mxu0 0
    %726 = vmatpush1.bf16.msra.mxu0 %v533
    %727 = vmatprep.subr.bf16.mxu0 0
    %728 = vmatpush1.bf16.msra.mxu0 %v534
    %729 = vmatprep.mubr.bf16.mxu0 %v220
    %730 = vmatmul.mubr.bf16.gmra.mrb[0].mxu0 %v219
    %v731 = vpop.f32.mrb[0].mxu0
    %v732 = vadd.f32 %v691, %v731
    %v733 = vpop.f32.mrb[0].mxu0
    %v734 = vpop.f32.mrb[0].mxu0
    %v735 = vadd.f32 %v694, %v734
    %v736 = vpop.f32.mrb[0].mxu0
    %737 = vdwg.mxu0
    %738 = vmatprep.subr.bf16.mxu0 0
    %739 = vmatpush1.bf16.msra.mxu0 %v535
    %740 = vmatprep.subr.bf16.mxu0 0
    %741 = vmatpush1.bf16.msra.mxu0 %v536
    %742 = vmatprep.subr.bf16.mxu0 0
    %743 = vmatpush1.bf16.msra.mxu0 %v537
    %744 = vmatprep.subr.bf16.mxu0 0
    %745 = vmatpush1.bf16.msra.mxu0 %v538
    %746 = vmatprep.subr.bf16.mxu0 0
    %747 = vmatpush1.bf16.msra.mxu0 %v539
    %748 = vmatprep.subr.bf16.mxu0 0
    %749 = vmatpush1.bf16.msra.mxu0 %v540
    %750 = vmatprep.subr.bf16.mxu0 0
    %751 = vmatpush1.bf16.msra.mxu0 %v541
    %752 = vmatprep.subr.bf16.mxu0 0
    %753 = vmatpush1.bf16.msra.mxu0 %v542
    %754 = vmatprep.subr.bf16.mxu0 0
    %755 = vmatpush1.bf16.msra.mxu0 %v543
    %756 = vmatprep.subr.bf16.mxu0 0
    %757 = vmatpush1.bf16.msra.mxu0 %v544
    %758 = vmatprep.subr.bf16.mxu0 0
    %759 = vmatpush1.bf16.msra.mxu0 %v545
    %760 = vmatprep.subr.bf16.mxu0 0
    %761 = vmatpush1.bf16.msra.mxu0 %v546
    %762 = vmatprep.subr.bf16.mxu0 0
    %763 = vmatpush1.bf16.msra.mxu0 %v547
    %764 = vmatprep.subr.bf16.mxu0 0
    %765 = vmatpush1.bf16.msra.mxu0 %v548
    %766 = vmatprep.subr.bf16.mxu0 0
    %767 = vmatpush1.bf16.msra.mxu0 %v549
    %768 = vmatprep.subr.bf16.mxu0 0
    %769 = vmatpush1.bf16.msra.mxu0 %v550
    %770 = vmatprep.mubr.bf16.mxu0 %v222
    %771 = vmatmul.mubr.bf16.gmra.mrb[0].mxu0 %v221
    %v772 = vpop.f32.mrb[0].mxu0
    %v773 = vadd.f32 %v732, %v772
    %v774 = vpop.f32.mrb[0].mxu0
    %v775 = vpop.f32.mrb[0].mxu0
    %v776 = vadd.f32 %v735, %v775
    %v777 = vpop.f32.mrb[0].mxu0
    %778 = vdwg.mxu0
    %v779 = vadd.f32 %v53, %v773
    %v780 = vadd.f32 %v54, %v776
    %781 = vst [vmem:[#allocation7] sm:$0xff] %v779
    %782 = vst [vmem:[#allocation7 + $0x8] sm:$0xff] %v780
    // Predicated region
    $region30: #{tpu_custom_call.1} parent=1 // pred_check
      %p783 = pneg %p47
    $region31: #{tpu_custom_call.1} parent=1 // pred_check_branch
      %785 = sbr.rel (%p783) target = $region33
    $region32: #{tpu_custom_call.1} parent=1 // pred_region
      %v786 = vld [vmem:[%s2] sm:$0xff]
      %v787 = vld [vmem:[%s2 + $0x8] sm:$0xff]
      %v788 = vld [vmem:[%s3] sm:$0x1]
      %790 = vset.pattern.permute.xlu0 0
      %791 = vperm.xlu0 %790, %v786
      %v792 = vpop.permute.xlu0 %791
      %795 = vset.pattern.permute.xlu0 0
      %796 = vperm.xlu0 %795, %v787
      %v797 = vpop.permute.xlu0 %796
      %v800 = vlaneseq
      %v801 = vshrl.u32 %v800, 7
      %v802 = vsub.s32 0, %v801
      %v803 = vrot.slane %v788, %v802
      %v805 = vadd.f32 %v792, %v803
      %v806 = vadd.f32 %v797, %v803
      %v807 = vld [vmem:[#allocation7] sm:$0xff]
      %v808 = vld [vmem:[#allocation7 + $0x8] sm:$0xff]
      %v809 = vmul.f32 %v807, 2.0
      %v810 = vmul.f32 %v808, 2.0
      %v811 = vsub.f32 %v805, %v809
      %v812 = vsub.f32 %v806, %v810
      %v813 = vmax.f32 %v811, 0.0
      %v814 = vmax.f32 %v812, 0.0
      %v815 = vsub.f32 0.0, %v813
      %v816 = vsub.f32 0.0, %v814
      %817 = vst [vmem:[#allocation7] sm:$0xff] %v815
      %818 = vst [vmem:[#allocation7 + $0x8] sm:$0xff] %v816
    $region33: #{tpu_custom_call.1} parent=1 // pred_fallthru
      _
    // Predicated region
    $region34: #{tpu_custom_call.1} parent=1 // pred_check
      _
    $region35: #{tpu_custom_call.1} parent=1 // pred_check_branch
      %820 = sbr.rel (0) target = $region37
    $region36: #{tpu_custom_call.1} parent=1 // pred_region
      %s822 = ssub.s32 256, 256
      %823 = vsyncadd [#allocation4], %s822
      %s824 = sshll.u32 [#allocation7], 4
      %s825 = int_to_ptr.vmem [resolvable:$true] %s824
      %830 = dma.vmem_to_hbm [thread:$0]  %s825, 256, %s4, [#allocation4], 128, 128, 8
    $region37: #{tpu_custom_call.1} parent=1 // pred_fallthru
      _
    // Predicated region
    $region38: #{tpu_custom_call.1} parent=1 // pred_check
      _
    $region39: #{tpu_custom_call.1} parent=1 // pred_check_branch
      %832 = sbr.rel (0) target = $region41
    $region40: #{tpu_custom_call.1} parent=1 // pred_region
      %833 = dma.done [#allocation4], 256
    $region41: #{tpu_custom_call.1} parent=1 // pred_fallthru
      _
    %834 = vsyncpa [#allocation3], 1
    %835 = vsyncpa [#allocation6], 1
    %836 = vsyncpa [#allocation4], 1

</llo_original>
